<compile_context>
chip_gen: v6e
topology: v6e:2x2x1
jax: 0.10.0
libtpu: 0.0.40
codegen_flags: <defaults>
</compile_context>

<pallas_src>
import functools

import jax
import jax.numpy as jnp
from jax.experimental import pallas as pl
from jax.experimental.pallas import tpu as pltpu


def _round_up(a, b):
    return ((a + b - 1) // b) * b


def _chip_config():
    """Returns (tensorcores_per_chip, per-step input-tile byte target)."""
    cores = 1
    try:
        kind = jax.devices()[0].device_kind.lower()
        if "v7" in kind:
            cores = 2
    except Exception:
        pass
    # HBM-bandwidth-bound kernel: ~4 MiB tiles sit past the roofline knee on
    # v5e/v6e and keep the ~0.35 us per-step overhead negligible even at
    # v7x's ~3.2 TB/s per-TC HBM bandwidth. Double-buffered this is well under
    # every generation's scoped-VMEM budget.
    return cores, 4 << 20


def _choose_block_n(n, row_bytes, target_bytes, cores):
    """Rows (N) per grid step: multiple of 8 (or == n when n <= 8), sized so
    the input tile is ~target_bytes. On multi-TC chips, cap so each core gets
    >= 2 steps (keeps per-core double-buffering)."""
    if n <= 8:
        return n
    bn = max(8, (target_bytes // max(row_bytes, 1)) // 8 * 8)
    if cores > 1:
        per_core = _round_up(-(-n // (2 * cores)), 8)
        bn = min(bn, per_core)
    # Never exceed N; keep a multiple of 8 so the output block stays legal
    # (partial trailing blocks are handled by Pallas).
    bn = min(bn, (n // 8) * 8)
    return bn


def _avg_matmul_kernel(x_ref, a_ref, o_ref, *, inv_t):
    # x_ref: (BN, T*C) lane-dense rows, native dtype (no full-tile upcast).
    # a_ref: (T*C, C) 0/1 tiled-identity matrix, native dtype (exact values).
    # o_ref: (BN, C). Accumulate on the MXU in f32, scale by 1/T in f32.
    acc = jnp.dot(x_ref[...], a_ref[...], preferred_element_type=jnp.float32)
    o_ref[...] = (acc * inv_t).astype(o_ref.dtype)


def _avg_reduce_kernel(x_ref, o_ref, *, t):
    # x_ref: (BN, T, BC) with BC lane-dense; o_ref: (BN, BC).
    # Short unrolled f32 accumulation over T -- avoids materializing a full
    # f32 copy of the (BN, T, BC) tile (matters for bf16 inputs).
    acc = x_ref[:, 0, :].astype(jnp.float32)
    for i in range(1, t):
        acc = acc + x_ref[:, i, :].astype(jnp.float32)
    o_ref[...] = (acc * (1.0 / t)).astype(o_ref.dtype)


def consensus_forward(x, consensus_type="avg", dim=1):
    """Pallas implementation of ConsensusModule.forward.

    x: (N, T, C) array. consensus_type in {'avg', 'identity', 'rnn'}.
    The original module stores `dim` but SegmentConsensusAvg always reduces
    over dim=1, so only dim=1 is supported here.
    """
    if consensus_type == "rnn":          # same aliasing as the PyTorch module
        consensus_type = "identity"

    if consensus_type == "identity":
        # Pure passthrough -- zero HBM traffic, no kernel launch.
        return x

    if consensus_type != "avg":
        raise ValueError(f"unknown consensus_type: {consensus_type}")
    if dim != 1:
        raise ValueError("only dim=1 (segment axis) is supported")

    N, T, C = x.shape
    itemsize = jnp.dtype(x.dtype).itemsize
    cores, target = _chip_config()

    if C < 128:
        # Lane-dense loads: view x as (N, T*C) (free row-major reshape) and
        # reduce via an MXU matmul against a constant 0/1 tiled-identity
        # matrix (MXU is idle in this mem-bound kernel).
        tc = T * C
        bn = _choose_block_n(N, tc * itemsize, target, cores)
        avg_mat = jnp.tile(jnp.eye(C, dtype=x.dtype), (T, 1))   # exact 0/1
        x2d = x.reshape(N, tc)
        vmem_limit = int(
            2 * (bn * tc + tc * C + bn * C) * itemsize   # double-buffered I/O
            + 4 * bn * C                                  # f32 dot result
            + (4 << 20))                                  # headroom
        cost = pl.CostEstimate(
            flops=2 * N * tc * C,
            transcendentals=0,
            bytes_accessed=(N * tc + tc * C + N * C) * itemsize)
        out2d = pl.pallas_call(
            functools.partial(_avg_matmul_kernel, inv_t=1.0 / T),
            out_shape=jax.ShapeDtypeStruct((N, C), x.dtype),
            grid=(pl.cdiv(N, bn),),
            in_specs=[
                pl.BlockSpec((bn, tc), lambda i: (i, 0)),
                pl.BlockSpec((tc, C), lambda i: (0, 0)),
            ],
            out_specs=pl.BlockSpec((bn, C), lambda i: (i, 0)),
            compiler_params=pltpu.CompilerParams(
                dimension_semantics=("parallel",),
                vmem_limit_bytes=vmem_limit),
            cost_estimate=cost,
        )(x2d, avg_mat)
    else:
        # C already lane-dense; VPU reduction over T. Block C as well so that
        # (a) an 8-row tile can never blow the VMEM budget for huge T*C and
        # (b) small-N inputs still get a multi-step grid (pipelining, and
        # both TensorCores on v7x).
        if 8 * T * C * itemsize <= target:
            bc = C
        else:
            bc = max(128, (target // (8 * T * itemsize)) // 128 * 128)
            if bc >= C:
                bc = C
        bn = _choose_block_n(N, T * bc * itemsize, target, cores)
        vmem_limit = int(
            2 * (bn * T * bc + bn * bc) * itemsize        # double-buffered I/O
            + 4 * bn * bc                                  # f32 accumulator
            + (4 << 20))                                   # headroom
        cost = pl.CostEstimate(
            flops=N * T * C,
            transcendentals=0,
            bytes_accessed=(N * T * C + N * C) * itemsize)
        out2d = pl.pallas_call(
            functools.partial(_avg_reduce_kernel, t=T),
            out_shape=jax.ShapeDtypeStruct((N, C), x.dtype),
            grid=(pl.cdiv(N, bn), pl.cdiv(C, bc)),
            in_specs=[pl.BlockSpec((bn, T, bc), lambda i, j: (i, 0, j))],
            out_specs=pl.BlockSpec((bn, bc), lambda i, j: (i, j)),
            compiler_params=pltpu.CompilerParams(
                dimension_semantics=("parallel", "parallel"),
                vmem_limit_bytes=vmem_limit),
            cost_estimate=cost,
        )(x)

    # Free reshape back to the PyTorch keepdim layout (N, 1, C).
    return out2d.reshape(N, 1, C)

# TODO(synk): backward passes of the custom autograd Functions are not
# implemented (forward-only kernel, as requested).


if __name__ == "__main__":
    key = jax.random.PRNGKey(0)

    # 'avg' consensus, matmul path (C < 128).
    N, T, C = 2, 8, 32  # batch, num_segments, num_classes
    x = jax.random.normal(key, (N, T, C), dtype=jnp.float32)
    y_avg = jax.block_until_ready(consensus_forward(x, "avg"))
    ref_avg = jnp.mean(x, axis=1, keepdims=True)
    assert y_avg.shape == (N, 1, C)
    assert jnp.allclose(y_avg, ref_avg, atol=1e-5, rtol=1e-5)

    # 'identity' consensus (also covers the 'rnn' alias) -- pure passthrough.
    y_id = jax.block_until_ready(consensus_forward(x, "identity"))
    assert y_id.shape == (N, T, C) and jnp.allclose(y_id, x)
    y_rnn = jax.block_until_ready(consensus_forward(x, "rnn"))
    assert jnp.allclose(y_rnn, x)

    # Reduce path (C >= 128) with a ragged batch (partial N blocks).
    N2, T2, C2 = 20, 4, 256
    x2 = jax.random.normal(jax.random.PRNGKey(1), (N2, T2, C2),
                           dtype=jnp.float32)
    y2 = jax.block_until_ready(consensus_forward(x2, "avg"))
    ref2 = jnp.mean(x2, axis=1, keepdims=True)
    assert y2.shape == (N2, 1, C2)
    assert jnp.allclose(y2, ref2, atol=1e-5, rtol=1e-5)

    # bf16 input: native-dtype MXU path with f32 accumulation.
    x3 = jax.random.normal(jax.random.PRNGKey(2), (4, 8, 32)).astype(
        jnp.bfloat16)
    y3 = jax.block_until_ready(consensus_forward(x3, "avg"))
    ref3 = jnp.mean(x3.astype(jnp.float32), axis=1,
                    keepdims=True).astype(jnp.bfloat16)
    assert y3.shape == (4, 1, 32)
    assert jnp.allclose(y3.astype(jnp.float32), ref3.astype(jnp.float32),
                        atol=2e-2, rtol=2e-2)

    print("KERNEL_OK")
</pallas_src>

<mosaic_0001>
module attributes {stable_mosaic.version = 11 : i64} {
  func.func @_avg_matmul_kernel(%arg0: i32, %arg1: memref<2x256xf32, #tpu.memory_space<vmem>>, %arg2: memref<256x32xf32, #tpu.memory_space<vmem>>, %arg3: memref<2x32xf32, #tpu.memory_space<vmem>>) attributes {dimension_semantics = [#tpu.dimension_semantics<parallel>], iteration_bounds = array<i64: 1>, scalar_prefetch = 0 : i64, scratch_operands = 0 : i64, tpu.core_type = #tpu.core_type<tc>, window_params = [{transform_indices = @transform_0, window_bounds = array<i64: 2, 256>}, {pipeline_mode = #tpu.pipeline_mode<synchronous>, transform_indices = @transform_1, window_bounds = array<i64: 256, 32>}, {transform_indices = @transform_2, window_bounds = array<i64: 2, 32>}]} {
    %c0 = arith.constant 0 : index
    %c0_0 = arith.constant 0 : index
    %0 = vector.load %arg1[%c0, %c0_0] : memref<2x256xf32, #tpu.memory_space<vmem>>, vector<2x256xf32>
    %c0_1 = arith.constant 0 : index
    %c0_2 = arith.constant 0 : index
    %1 = vector.load %arg2[%c0_1, %c0_2] : memref<256x32xf32, #tpu.memory_space<vmem>>, vector<256x32xf32>
    %cst = arith.constant dense<0.000000e+00> : vector<2x32xf32>
    %2 = tpu.matmul %0, %1, %cst {dimension_numbers = #tpu.dot_dimension_numbers<[1], [0], [0], [1], [0, 0, 1, 1], [], []>} : vector<2x256xf32>, vector<256x32xf32>, vector<2x32xf32> -> vector<2x32xf32>
    %cst_3 = arith.constant 1.250000e-01 : f32
    %3 = vector.broadcast %cst_3 : f32 to vector<2x32xf32>
    %4 = arith.mulf %2, %3 : vector<2x32xf32>
    %c0_4 = arith.constant 0 : index
    %c0_5 = arith.constant 0 : index
    %5 = vector.load %arg3[%c0_4, %c0_5] : memref<2x32xf32, #tpu.memory_space<vmem>>, vector<2x32xf32>
    tpu.vector_store %arg3[%c0_4, %c0_5], %4 {strides = array<i32>} : memref<2x32xf32, #tpu.memory_space<vmem>>, vector<2x32xf32>,
    return
  }
  func.func @transform_0(%arg0: i32) -> (i32, i32) {
    %c0_i32 = arith.constant 0 : i32
    %c0_i32_0 = arith.constant 0 : i32
    return %arg0, %c0_i32 : i32, i32
  }
  func.func @transform_1(%arg0: i32) -> (i32, i32) {
    %c0_i32 = arith.constant 0 : i32
    %c0_i32_0 = arith.constant 0 : i32
    %c0_i32_1 = arith.constant 0 : i32
    return %c0_i32, %c0_i32_0 : i32, i32
  }
  func.func @transform_2(%arg0: i32) -> (i32, i32) {
    %c0_i32 = arith.constant 0 : i32
    %c0_i32_0 = arith.constant 0 : i32
    return %arg0, %c0_i32 : i32, i32
  }
}

</mosaic_0001>

<llo_original>
// kernel: tpu_custom_call.1
$region0: #{tpu_custom_call.1}
  #allocation0 [shape = 'u32[]', space=smem, size = 0x4, offset = 0x4, fixed_abs, tag = 'smem constant byte address 0x4 - core index']
  #allocation1 [shape = 'u32[144,128]{1,0:T(1,128)}', space=vmem, size = 0x12000, scoped, tag = 'internal scratch']
  %s0 = inlined_call_operand.vmem [shape: f32[2,256], index: 0, kind: input, shape index: {}]
  %s1 = inlined_call_operand.vmem [shape: f32[256,32], index: 1, kind: input, shape index: {}]
  %s2 = inlined_call_operand.hbm [shape: f32[2,32], index: 2, kind: output, shape index: {}]
  %s3 = sld [smem:[#allocation0]]
  $region18: #{tpu_custom_call.1} parent=0
    _
  %s5 = ssub.s32 1, %s3
  %s6 = scalar_select 0, %s5, %s3
  $region1: #{tpu_custom_call.1} parent=0
    #allocation2 [shape = 'u8[1024]{0}', space=vmem, size = 0x400, scoped, tag = 'output window, operand 0, single buffered']
    #allocation3 [shape = 's32[1]{0}', space=sflag, size = 0x4, scoped, tag = 'scoped memory for tpu_custom_call.1']
    %7 = vsyncpa [#allocation3], 0
    // Predicated region
    $region2: #{tpu_custom_call.1} parent=1 // pred_check
      _
    $region3: #{tpu_custom_call.1} parent=1 // pred_check_branch
      %9 = sbr.rel (0) target = $region5
    $region4: #{tpu_custom_call.1} parent=1 // pred_region
      _
    $region5: #{tpu_custom_call.1} parent=1 // pred_fallthru
      _
    // Predicated region
    $region6: #{tpu_custom_call.1} parent=1 // pred_check
      _
    $region7: #{tpu_custom_call.1} parent=1 // pred_check_branch
      %11 = sbr.rel (0) target = $region9
    $region8: #{tpu_custom_call.1} parent=1 // pred_region
      _
    $region9: #{tpu_custom_call.1} parent=1 // pred_fallthru
      _
    %v12 = vld [vmem:[%s0] sm:$0xf]
    %v13 = vld [vmem:[%s1] sm:$0xff]
    %v14 = vld [vmem:[%s1 + $0x8] sm:$0xff]
    %v15 = vld [vmem:[%s1 + $0x10] sm:$0xff]
    %v16 = vld [vmem:[%s1 + $0x18] sm:$0xff]
    %v17 = vld [vmem:[%s1 + $0x20] sm:$0xff]
    %v18 = vld [vmem:[%s1 + $0x28] sm:$0xff]
    %v19 = vld [vmem:[%s1 + $0x30] sm:$0xff]
    %v20 = vld [vmem:[%s1 + $0x38] sm:$0xff]
    %v21 = vld [vmem:[%s1 + $0x40] sm:$0xff]
    %v22 = vld [vmem:[%s1 + $0x48] sm:$0xff]
    %v23 = vld [vmem:[%s1 + $0x50] sm:$0xff]
    %v24 = vld [vmem:[%s1 + $0x58] sm:$0xff]
    %v25 = vld [vmem:[%s1 + $0x60] sm:$0xff]
    %v26 = vld [vmem:[%s1 + $0x68] sm:$0xff]
    %v27 = vld [vmem:[%s1 + $0x70] sm:$0xff]
    %v28 = vld [vmem:[%s1 + $0x78] sm:$0xff]
    %v29 = vld [vmem:[%s1 + $0x80] sm:$0xff]
    %v30 = vld [vmem:[%s1 + $0x88] sm:$0xff]
    %v31 = vld [vmem:[%s1 + $0x90] sm:$0xff]
    %v32 = vld [vmem:[%s1 + $0x98] sm:$0xff]
    %v33 = vld [vmem:[%s1 + $0xa0] sm:$0xff]
    %v34 = vld [vmem:[%s1 + $0xa8] sm:$0xff]
    %v35 = vld [vmem:[%s1 + $0xb0] sm:$0xff]
    %v36 = vld [vmem:[%s1 + $0xb8] sm:$0xff]
    %v37 = vld [vmem:[%s1 + $0xc0] sm:$0xff]
    %v38 = vld [vmem:[%s1 + $0xc8] sm:$0xff]
    %v39 = vld [vmem:[%s1 + $0xd0] sm:$0xff]
    %v40 = vld [vmem:[%s1 + $0xd8] sm:$0xff]
    %v41 = vld [vmem:[%s1 + $0xe0] sm:$0xff]
    %v42 = vld [vmem:[%s1 + $0xe8] sm:$0xff]
    %v43 = vld [vmem:[%s1 + $0xf0] sm:$0xff]
    %v44 = vld [vmem:[%s1 + $0xf8] sm:$0xff]
    %v47 = vunpack.c.l.s4 1983009808
    %v48 = vunpack.c.0.s8 %v47
    %v49 = vlaneseq
    %v50 = vshrl.u32 %v49, 7
    %v51 = vsub.s32 %v48, %v50
    %v52 = vrot.slane %v12, %v51
    %v53 = vcombine.high %v52, %v52
    %56 = vmatprep.subr.mxu0 0.0
    %57 = vmatpush1.msra.mxu0 %v28
    %58 = vmatprep.subr.mxu0 0.0
    %59 = vmatpush1.msra.mxu0 %v27
    %60 = vmatprep.subr.mxu0 0.0
    %61 = vmatpush1.msra.mxu0 %v26
    %62 = vmatprep.subr.mxu0 0.0
    %63 = vmatpush1.msra.mxu0 %v25
    %64 = vmatprep.subr.mxu0 0.0
    %65 = vmatpush1.msra.mxu0 %v24
    %66 = vmatprep.subr.mxu0 0.0
    %67 = vmatpush1.msra.mxu0 %v23
    %68 = vmatprep.subr.mxu0 0.0
    %69 = vmatpush1.msra.mxu0 %v22
    %70 = vmatprep.subr.mxu0 0.0
    %71 = vmatpush1.msra.mxu0 %v21
    %72 = vmatprep.subr.mxu0 0.0
    %73 = vmatpush1.msra.mxu0 %v20
    %74 = vmatprep.subr.mxu0 0.0
    %75 = vmatpush1.msra.mxu0 %v19
    %76 = vmatprep.subr.mxu0 0.0
    %77 = vmatpush1.msra.mxu0 %v18
    %78 = vmatprep.subr.mxu0 0.0
    %79 = vmatpush1.msra.mxu0 %v17
    %80 = vmatprep.subr.mxu0 0.0
    %81 = vmatpush1.msra.mxu0 %v16
    %82 = vmatprep.subr.mxu0 0.0
    %83 = vmatpush1.msra.mxu0 %v15
    %84 = vmatprep.subr.mxu0 0.0
    %85 = vmatpush1.msra.mxu0 %v14
    %86 = vmatprep.subr.mxu0 0.0
    %87 = vmatpush1.msra.mxu0 %v13
    %88 = vmatprep.subr.mxu0 0.0
    %89 = vmatpush2.msra.mxu0 %v44
    %90 = vmatprep.subr.mxu0 0.0
    %91 = vmatpush2.msra.mxu0 %v43
    %92 = vmatprep.subr.mxu0 0.0
    %93 = vmatpush2.msra.mxu0 %v42
    %94 = vmatprep.subr.mxu0 0.0
    %95 = vmatpush2.msra.mxu0 %v41
    %96 = vmatprep.subr.mxu0 0.0
    %97 = vmatpush2.msra.mxu0 %v40
    %98 = vmatprep.subr.mxu0 0.0
    %99 = vmatpush2.msra.mxu0 %v39
    %100 = vmatprep.subr.mxu0 0.0
    %101 = vmatpush2.msra.mxu0 %v38
    %102 = vmatprep.subr.mxu0 0.0
    %103 = vmatpush2.msra.mxu0 %v37
    %104 = vmatprep.subr.mxu0 0.0
    %105 = vmatpush2.msra.mxu0 %v36
    %106 = vmatprep.subr.mxu0 0.0
    %107 = vmatpush2.msra.mxu0 %v35
    %108 = vmatprep.subr.mxu0 0.0
    %109 = vmatpush2.msra.mxu0 %v34
    %110 = vmatprep.subr.mxu0 0.0
    %111 = vmatpush2.msra.mxu0 %v33
    %112 = vmatprep.subr.mxu0 0.0
    %113 = vmatpush2.msra.mxu0 %v32
    %114 = vmatprep.subr.mxu0 0.0
    %115 = vmatpush2.msra.mxu0 %v31
    %116 = vmatprep.subr.mxu0 0.0
    %117 = vmatpush2.msra.mxu0 %v30
    %118 = vmatprep.subr.mxu0 0.0
    %119 = vmatpush2.msra.mxu0 %v29
    %120 = vmatprep.mubr.f32.mxu0 %v53
    %121 = vmatmul.mubr.f32.gmra.mxu0 %v52
    %v122 = vpop.f32.mrf.mxu0
    %v123 = vadd.f32 0.0, %v122
    %v124 = vpop.f32.mrf.mxu0
    %125 = vdwg.mxu0
    %v126 = vmul.f32 %v123, 0.125
    %vm127 = vcmask 254976
    %128 = vst.msk [vmem:[#allocation2] sm:$0x3] %vm127, %v126
    // Predicated region
    $region10: #{tpu_custom_call.1} parent=1 // pred_check
      _
    $region11: #{tpu_custom_call.1} parent=1 // pred_check_branch
      %130 = sbr.rel (0) target = $region13
    $region12: #{tpu_custom_call.1} parent=1 // pred_region
      %s132 = ssub.s32 32, 32
      %133 = vsyncadd [#allocation3], %s132
      %s135 = sshll.u32 [#allocation2], 4
      %s136 = int_to_ptr.vmem [resolvable:$true] %s135
      %138 = dma.vmem_to_hbm [thread:$0]  %s136, 32, %s2, [#allocation3]
    $region13: #{tpu_custom_call.1} parent=1 // pred_fallthru
      _
    // Predicated region
    $region14: #{tpu_custom_call.1} parent=1 // pred_check
      _
    $region15: #{tpu_custom_call.1} parent=1 // pred_check_branch
      %140 = sbr.rel (0) target = $region17
    $region16: #{tpu_custom_call.1} parent=1 // pred_region
      %141 = dma.done [#allocation3], 32
    $region17: #{tpu_custom_call.1} parent=1 // pred_fallthru
      _
    %142 = vsyncpa [#allocation3], 1

</llo_original>
